<compile_context>
chip_gen: v6e
topology: v6e:2x2x1
jax: 0.10.0
libtpu: 0.0.40
codegen_flags: <defaults>
</compile_context>

<pallas_src>
import jax
import jax.numpy as jnp
from jax import lax
from jax.experimental import pallas as pl
from jax.experimental.pallas import tpu as pltpu

_LANE = 128


def _tpu_generation_info():
    """Best-effort (vmem_capacity_bytes, tensorcores_per_chip) for this TPU."""
    vmem_cap = None
    num_cores = None
    try:
        info = pltpu.get_tpu_info()
        v = getattr(info, "vmem_capacity_bytes", None)
        if v is not None and int(v) > 0:
            vmem_cap = int(v)
        for attr in ("num_tensorcores", "tensorcore_count", "num_cores",
                     "cores_per_chip", "tensor_cores_per_chip"):
            c = getattr(info, attr, None)
            if c is not None and int(c) > 0:
                num_cores = int(c)
                break
    except Exception:
        pass
    kind = ""
    try:
        kind = jax.devices()[0].device_kind.lower()
    except Exception:
        pass
    if vmem_cap is None:
        # v7x: 64 MiB per TensorCore; v4/v5e/v6e: 128 MiB.
        vmem_cap = 64 * 1024 * 1024 if "v7" in kind else 128 * 1024 * 1024
    if num_cores is None:
        num_cores = 2 if "v7" in kind else 1
    return int(vmem_cap), int(num_cores)


def style_loss_forward(x_nchw, target_gram, weight, *, max_tk=4096):
    """Returns (out, loss, G) matching PyTorch Style_Loss.forward side effects.

    out  = input (clone),  loss = MSE(gram(input)*weight, target),  G = gram*weight
    """
    a, b, c, d = x_nchw.shape
    M, K = a * b, c * d
    feat = x_nchw.reshape(M, K)          # native dtype; NO padded HBM copy
    itemsize = jnp.dtype(feat.dtype).itemsize

    vmem_cap, num_cores = _tpu_generation_info()
    vmem_budget = (vmem_cap * 4) // 5    # ~80% of physical VMEM (Mosaic headroom)
    gram_bytes = M * M * 4               # one f32 (M, M) Gram block

    # Residency model: 2x Gram (double-buffered resident output block)
    #                + 2x (M, tk) feature K-tile (double-buffered input).
    feat_budget = vmem_budget - 2 * gram_bytes
    if feat_budget < 2 * M * _LANE * itemsize:
        # TODO(synk): 2-D (i, j) tiling of the (M, M) Gram output with an
        # (i, j, k) grid once the resident-Gram design no longer fits VMEM.
        raise NotImplementedError(
            f"Gram matrix too large for VMEM-resident design (M={M}, "
            f"vmem={vmem_cap} bytes); needs 2-D output tiling."
        )

    # --- K-tile selection (no feature padding) ------------------------------
    tk_cap = (feat_budget // (2 * M * itemsize)) // _LANE * _LANE
    max_tk = max(_LANE, (int(max_tk) // _LANE) * _LANE)
    k_lane = -(-K // _LANE) * _LANE
    tk = int(min(max_tk, tk_cap, k_lane))
    if tk >= K:
        tk = K                           # single full-width tile, no masking
    num_kt = -(-K // tk)
    needs_mask = (K % tk) != 0           # last tile is partial -> mask in-kernel

    # Split K across 2 partial Grams only when the chip really has 2 TensorCores
    # (v7x); on 1-TC chips (v5e/v6e) a split is pure overhead.
    n_split = 2 if (num_cores >= 2 and num_kt >= 2 and num_kt % 2 == 0) else 1
    kt_per_split = num_kt // n_split

    # Fuse the weight/(a*b*c*d) scale into the final accumulator write when the
    # weight is a static Python scalar (free VPU work under MXU/DMA slack).
    fuse_scale = isinstance(weight, (int, float)) and not isinstance(weight, bool)
    scale = (float(weight) / float(M * K)) if fuse_scale else None

    def gram_kernel(feat_ref, out_ref):
        # Grid = (n_split, k_tiles_per_split); axis 1 is the K reduction.
        # feat_ref: (M, tk) VMEM  current K-tile (native dtype)
        # out_ref:  (M, M)  VMEM  f32 partial Gram, resident across the k axis
        k = pl.program_id(1)

        @pl.when(k == 0)
        def _():
            out_ref[...] = jnp.zeros_like(out_ref)

        f = feat_ref[...]
        if needs_mask:
            # Zero the out-of-bounds columns of the (single) partial last tile.
            tile_idx = pl.program_id(0) * kt_per_split + k
            col = lax.broadcasted_iota(jnp.int32, f.shape, 1) + tile_idx * tk
            f = jnp.where(col < K, f, jnp.zeros_like(f))

        # f @ f.T as a contraction over the K (lane) axis: RHS latched
        # transposed inside the MXU, no per-step XLU transpose of the tile.
        out_ref[...] += lax.dot_general(
            f, f, (((1,), (1,)), ((), ())), preferred_element_type=jnp.float32
        )

        if fuse_scale:
            @pl.when(k == pl.num_programs(1) - 1)
            def _():
                out_ref[...] = out_ref[...] * jnp.float32(scale)

    needed = 2 * M * tk * itemsize + 2 * gram_bytes
    vmem_limit = int(min(max(needed + 8 * 1024 * 1024, 32 * 1024 * 1024), vmem_cap))

    partials = pl.pallas_call(
        gram_kernel,
        out_shape=jax.ShapeDtypeStruct((n_split, M, M), jnp.float32),
        grid_spec=pltpu.PrefetchScalarGridSpec(
            num_scalar_prefetch=0,
            grid=(n_split, kt_per_split),
            in_specs=[
                # feature K-tiles; split s owns a contiguous range of K tiles
                pl.BlockSpec((M, tk), lambda s, k: (0, s * kt_per_split + k)),
            ],
            out_specs=pl.BlockSpec((None, M, M), lambda s, k: (s, 0, 0)),
        ),
        compiler_params=pltpu.CompilerParams(
            dimension_semantics=("parallel", "arbitrary"),
            vmem_limit_bytes=vmem_limit,
        ),
    )(feat)

    # Cheap epilogue in plain XLA (kept out of kernel VMEM residency on purpose).
    G = partials[0] if n_split == 1 else (partials[0] + partials[1])
    if not fuse_scale:
        G = G * (weight / jnp.float32(M * K))
    diff = G - target_gram.astype(jnp.float32)   # G stays f32 (minor vs. PyTorch dtype)
    loss = jnp.mean(diff * diff)                 # nn.MSELoss (mean reduction)
    out = x_nchw  # forward returns input.clone(); arrays are immutable in JAX
    return out, loss, G


def _gram_ref(x_nchw):
    """Plain-JAX reference Gram (target setup + correctness check)."""
    a, b, c, d = x_nchw.shape
    f = x_nchw.reshape(a * b, c * d).astype(jnp.float32)
    return (f @ f.T) / float(a * b * c * d)


if __name__ == "__main__":
    key = jax.random.PRNGKey(0)
    k_style, k_input = jax.random.split(key)

    # Small NCHW conv-feature-map shape: (a, b, c, d) = (2, 4, 16, 16)
    a, b, c, d = 2, 4, 16, 16
    weight = 1200.0

    # __init__ setup (glue, plain JAX): target = gram(style_feature) * weight, detached.
    style_feat = jax.random.normal(k_style, (a, b, c, d), dtype=jnp.float32)
    target_gram = _gram_ref(style_feat) * weight

    # Forward input.
    x = jax.random.normal(k_input, (a, b, c, d), dtype=jnp.float32)

    out, loss, G = style_loss_forward(x, target_gram, weight)
    jax.block_until_ready((out, loss, G))

    # Reference check.
    G_ref = _gram_ref(x) * weight
    loss_ref = jnp.mean((G_ref - target_gram) ** 2)
    assert jnp.allclose(G, G_ref, rtol=1e-5, atol=1e-5)
    assert jnp.allclose(loss, loss_ref, rtol=1e-5, atol=1e-5)
    assert jnp.array_equal(out, x)

    print("KERNEL_OK")
</pallas_src>

<mosaic_0001>
module attributes {stable_mosaic.version = 11 : i64} {
  func.func @gram_kernel(%arg0: i32, %arg1: i32, %arg2: memref<8x256xf32, #tpu.memory_space<vmem>>, %arg3: memref<1x8x8xf32, #tpu.memory_space<vmem>>) attributes {dimension_semantics = [#tpu.dimension_semantics<parallel>, #tpu.dimension_semantics<arbitrary>], iteration_bounds = array<i64: 1, 1>, scalar_prefetch = 0 : i64, scratch_operands = 0 : i64, tpu.core_type = #tpu.core_type<tc>, window_params = [{transform_indices = @transform_0, window_bounds = array<i64: 8, 256>}, {transform_indices = @transform_1, window_bounds = array<i64: 1, 8, 8>}]} {
    %c0_i32 = arith.constant 0 : i32
    %0 = arith.cmpi eq, %arg1, %c0_i32 : i32
    %1 = arith.extui %0 : i1 to i32
    %c0_i32_0 = arith.constant 0 : i32
    %2 = arith.cmpi ne, %1, %c0_i32_0 : i32
    scf.if %2 {
      %cst_10 = arith.constant 0.000000e+00 : f32
      %14 = vector.broadcast %cst_10 : f32 to vector<8x8xf32>
      %c0_11 = arith.constant 0 : index
      %c0_12 = arith.constant 0 : index
      %c0_13 = arith.constant 0 : index
      %15 = vector.load %arg3[%c0_11, %c0_12, %c0_13] : memref<1x8x8xf32, #tpu.memory_space<vmem>>, vector<1x8x8xf32>
      %16 = vector.shape_cast %15 : vector<1x8x8xf32> to vector<8x8xf32>
      %17 = vector.shape_cast %14 : vector<8x8xf32> to vector<1x8x8xf32>
      tpu.vector_store %arg3[%c0_11, %c0_12, %c0_13], %17 {strides = array<i32>} : memref<1x8x8xf32, #tpu.memory_space<vmem>>, vector<1x8x8xf32>,
    } else {
    }
    %c0 = arith.constant 0 : index
    %c0_1 = arith.constant 0 : index
    %3 = vector.load %arg2[%c0, %c0_1] : memref<8x256xf32, #tpu.memory_space<vmem>>, vector<8x256xf32>
    %c0_2 = arith.constant 0 : index
    %c0_3 = arith.constant 0 : index
    %c0_4 = arith.constant 0 : index
    %4 = vector.load %arg3[%c0_2, %c0_3, %c0_4] : memref<1x8x8xf32, #tpu.memory_space<vmem>>, vector<1x8x8xf32>
    %5 = vector.shape_cast %4 : vector<1x8x8xf32> to vector<8x8xf32>
    %cst = arith.constant dense<0.000000e+00> : vector<8x8xf32>
    %6 = tpu.matmul %3, %3, %cst {dimension_numbers = #tpu.dot_dimension_numbers<[1], [1], [0], [0], [0, 0, 1, 0], [], []>} : vector<8x256xf32>, vector<8x256xf32>, vector<8x8xf32> -> vector<8x8xf32>
    %7 = arith.addf %5, %6 : vector<8x8xf32>
    %c0_5 = arith.constant 0 : index
    %c0_6 = arith.constant 0 : index
    %c0_7 = arith.constant 0 : index
    %8 = vector.load %arg3[%c0_5, %c0_6, %c0_7] : memref<1x8x8xf32, #tpu.memory_space<vmem>>, vector<1x8x8xf32>
    %9 = vector.shape_cast %8 : vector<1x8x8xf32> to vector<8x8xf32>
    %10 = vector.shape_cast %7 : vector<8x8xf32> to vector<1x8x8xf32>
    tpu.vector_store %arg3[%c0_5, %c0_6, %c0_7], %10 {strides = array<i32>} : memref<1x8x8xf32, #tpu.memory_space<vmem>>, vector<1x8x8xf32>,
    %c0_i32_8 = arith.constant 0 : i32
    %11 = arith.cmpi eq, %arg1, %c0_i32_8 : i32
    %12 = arith.extui %11 : i1 to i32
    %c0_i32_9 = arith.constant 0 : i32
    %13 = arith.cmpi ne, %12, %c0_i32_9 : i32
    scf.if %13 {
      %c0_10 = arith.constant 0 : index
      %c0_11 = arith.constant 0 : index
      %c0_12 = arith.constant 0 : index
      %14 = vector.load %arg3[%c0_10, %c0_11, %c0_12] : memref<1x8x8xf32, #tpu.memory_space<vmem>>, vector<1x8x8xf32>
      %15 = vector.shape_cast %14 : vector<1x8x8xf32> to vector<8x8xf32>
      %cst_13 = arith.constant 0.5859375 : f32
      %16 = vector.broadcast %cst_13 : f32 to vector<8x8xf32>
      %17 = arith.mulf %15, %16 : vector<8x8xf32>
      %c0_14 = arith.constant 0 : index
      %c0_15 = arith.constant 0 : index
      %c0_16 = arith.constant 0 : index
      %18 = vector.load %arg3[%c0_14, %c0_15, %c0_16] : memref<1x8x8xf32, #tpu.memory_space<vmem>>, vector<1x8x8xf32>
      %19 = vector.shape_cast %18 : vector<1x8x8xf32> to vector<8x8xf32>
      %20 = vector.shape_cast %17 : vector<8x8xf32> to vector<1x8x8xf32>
      tpu.vector_store %arg3[%c0_14, %c0_15, %c0_16], %20 {strides = array<i32>} : memref<1x8x8xf32, #tpu.memory_space<vmem>>, vector<1x8x8xf32>,
    } else {
    }
    return
  }
  func.func @transform_0(%arg0: i32, %arg1: i32) -> (i32, i32) {
    %c1_i32 = arith.constant 1 : i32
    %0 = arith.muli %arg0, %c1_i32 : i32
    %1 = arith.addi %0, %arg1 : i32
    %c0_i32 = arith.constant 0 : i32
    %c0_i32_0 = arith.constant 0 : i32
    return %c0_i32, %1 : i32, i32
  }
  func.func @transform_1(%arg0: i32, %arg1: i32) -> (i32, i32, i32) {
    %c0_i32 = arith.constant 0 : i32
    %c0_i32_0 = arith.constant 0 : i32
    %c0_i32_1 = arith.constant 0 : i32
    return %arg0, %c0_i32, %c0_i32_0 : i32, i32, i32
  }
}

</mosaic_0001>

<llo_original>
// kernel: tpu_custom_call.1
$region0: #{tpu_custom_call.1}
  #allocation0 [shape = 'u32[]', space=smem, size = 0x4, offset = 0x4, fixed_abs, tag = 'smem constant byte address 0x4 - core index']
  #allocation1 [shape = 'u32[144,128]{1,0:T(1,128)}', space=vmem, size = 0x12000, scoped, tag = 'internal scratch']
  %s0 = inlined_call_operand.hbm [shape: f32[8,256], index: 0, kind: input, shape index: {}]
  %s1 = inlined_call_operand.hbm [shape: f32[1,8,8], index: 1, kind: output, shape index: {}]
  %s2 = sld [smem:[#allocation0]]
  $region26: #{tpu_custom_call.1} parent=0
    _
  %s4 = ssub.s32 1, %s2
  %s5 = scalar_select 0, %s4, %s2
  $region1: #{tpu_custom_call.1} parent=0
    #allocation2 [shape = 'u8[8192]{0}', space=vmem, size = 0x2000, scoped, tag = 'input window, operand 0, single buffered']
    #allocation3 [shape = 's32[1]{0}', space=sflag, size = 0x4, scoped, tag = 'scoped memory for tpu_custom_call.1']
    #allocation4 [shape = 's32[1]{0}', space=sflag, size = 0x4, scoped, tag = 'scoped memory for tpu_custom_call.1']
    #allocation5 [shape = 'u8[4096]{0}', space=vmem, size = 0x1000, scoped, tag = 'output window, operand 0, single buffered']
    %6 = vsyncpa [#allocation3], 0
    %7 = vsyncpa [#allocation4], 0
    // Predicated region
    $region2: #{tpu_custom_call.1} parent=1 // pred_check
      _
    $region3: #{tpu_custom_call.1} parent=1 // pred_check_branch
      %9 = sbr.rel (0) target = $region5
    $region4: #{tpu_custom_call.1} parent=1 // pred_region
      %s10 = sadd.s32 0, 0
      %s11 = smul.u32 2, %s10
      %s13 = ssub.s32 256, 256
      %14 = vsyncadd [#allocation3], %s13
      %s15 = smul.addr %s11, 128
      %s16 = scalar_lea.hbm %s0, %s15
      %s18 = sshll.u32 [#allocation2], 4
      %s19 = int_to_ptr.vmem [resolvable:$true] %s18
      %21 = dma.hbm_to_vmem [thread:$0]  %s16, 256, %s19, [#allocation3]
    $region5: #{tpu_custom_call.1} parent=1 // pred_fallthru
      _
    // Predicated region
    $region6: #{tpu_custom_call.1} parent=1 // pred_check
      _
    $region7: #{tpu_custom_call.1} parent=1 // pred_check_branch
      %23 = sbr.rel (0) target = $region9
    $region8: #{tpu_custom_call.1} parent=1 // pred_region
      %24 = dma.done [#allocation3], 256
    $region9: #{tpu_custom_call.1} parent=1 // pred_fallthru
      _
    %s25 = sadd.s32 0, 0
    %s26 = smul.u32 2, %s25
    %p27 = scmp.eq.s32.totalorder 0, 0
    // Predicated region
    $region10: #{tpu_custom_call.1} parent=1 // pred_check
      %p28 = pneg %p27
    $region11: #{tpu_custom_call.1} parent=1 // pred_check_branch
      %30 = sbr.rel (%p28) target = $region13
    $region12: #{tpu_custom_call.1} parent=1 // pred_region
      %vm31 = vcmask 64512
      %32 = vst.msk [vmem:[#allocation5] sm:$0xff] %vm31, 0.0
    $region13: #{tpu_custom_call.1} parent=1 // pred_fallthru
      _
    %v33 = vld [vmem:[#allocation2] sm:$0xff]
    %v34 = vld [vmem:[#allocation2 + $0x8] sm:$0xff]
    %v35 = vld [vmem:[#allocation5] sm:$0xff]
    %36 = vmatprep.subr.mxu0 0.0
    %37 = vmatpush1.xpose.msra.mxu0 0.0
    %38 = vmatprep.subr.mxu0 0.0
    %39 = vmatpush1.xpose.msra.mxu0 0.0
    %40 = vmatprep.subr.mxu0 0.0
    %41 = vmatpush1.xpose.msra.mxu0 0.0
    %42 = vmatprep.subr.mxu0 0.0
    %43 = vmatpush1.xpose.msra.mxu0 0.0
    %44 = vmatprep.subr.mxu0 0.0
    %45 = vmatpush1.xpose.msra.mxu0 0.0
    %46 = vmatprep.subr.mxu0 0.0
    %47 = vmatpush1.xpose.msra.mxu0 0.0
    %48 = vmatprep.subr.mxu0 0.0
    %49 = vmatpush1.xpose.msra.mxu0 0.0
    %50 = vmatprep.subr.mxu0 0.0
    %51 = vmatpush1.xpose.msra.mxu0 0.0
    %52 = vmatprep.subr.mxu0 0.0
    %53 = vmatpush1.xpose.msra.mxu0 0.0
    %54 = vmatprep.subr.mxu0 0.0
    %55 = vmatpush1.xpose.msra.mxu0 0.0
    %56 = vmatprep.subr.mxu0 0.0
    %57 = vmatpush1.xpose.msra.mxu0 0.0
    %58 = vmatprep.subr.mxu0 0.0
    %59 = vmatpush1.xpose.msra.mxu0 0.0
    %60 = vmatprep.subr.mxu0 0.0
    %61 = vmatpush1.xpose.msra.mxu0 0.0
    %62 = vmatprep.subr.mxu0 0.0
    %63 = vmatpush1.xpose.msra.mxu0 0.0
    %64 = vmatprep.subr.mxu0 0.0
    %65 = vmatpush1.xpose.msra.mxu0 0.0
    %66 = vmatprep.subr.mxu0 %v34
    %67 = vmatpush1.xpose.msra.mxu0 %v33
    %68 = vmatprep.subr.mxu0 0.0
    %69 = vmatpush2.xpose.msra.mxu0 0.0
    %70 = vmatprep.subr.mxu0 0.0
    %71 = vmatpush2.xpose.msra.mxu0 0.0
    %72 = vmatprep.subr.mxu0 0.0
    %73 = vmatpush2.xpose.msra.mxu0 0.0
    %74 = vmatprep.subr.mxu0 0.0
    %75 = vmatpush2.xpose.msra.mxu0 0.0
    %76 = vmatprep.subr.mxu0 0.0
    %77 = vmatpush2.xpose.msra.mxu0 0.0
    %78 = vmatprep.subr.mxu0 0.0
    %79 = vmatpush2.xpose.msra.mxu0 0.0
    %80 = vmatprep.subr.mxu0 0.0
    %81 = vmatpush2.xpose.msra.mxu0 0.0
    %82 = vmatprep.subr.mxu0 0.0
    %83 = vmatpush2.xpose.msra.mxu0 0.0
    %84 = vmatprep.subr.mxu0 0.0
    %85 = vmatpush2.xpose.msra.mxu0 0.0
    %86 = vmatprep.subr.mxu0 0.0
    %87 = vmatpush2.xpose.msra.mxu0 0.0
    %88 = vmatprep.subr.mxu0 0.0
    %89 = vmatpush2.xpose.msra.mxu0 0.0
    %90 = vmatprep.subr.mxu0 0.0
    %91 = vmatpush2.xpose.msra.mxu0 0.0
    %92 = vmatprep.subr.mxu0 0.0
    %93 = vmatpush2.xpose.msra.mxu0 0.0
    %94 = vmatprep.subr.mxu0 0.0
    %95 = vmatpush2.xpose.msra.mxu0 0.0
    %96 = vmatprep.subr.mxu0 0.0
    %97 = vmatpush2.xpose.msra.mxu0 0.0
    %98 = vmatprep.subr.mxu0 0.0
    %99 = vmatpush2.xpose.msra.mxu0 0.0
    %100 = vmatprep.mubr.f32.mxu0 %v34
    %101 = vmatmul.mubr.f32.gmra.mxu0 %v33
    %v102 = vpop.f32.mrf.mxu0
    %v103 = vadd.f32 0.0, %v102
    %v104 = vpop.f32.mrf.mxu0
    %105 = vdwg.mxu0
    %v106 = vadd.f32 %v35, %v103
    %vm107 = vcmask 64512
    %108 = vst.msk [vmem:[#allocation5] sm:$0xff] %vm107, %v106
    // Predicated region
    $region14: #{tpu_custom_call.1} parent=1 // pred_check
      %p109 = pneg %p27
    $region15: #{tpu_custom_call.1} parent=1 // pred_check_branch
      %111 = sbr.rel (%p109) target = $region17
    $region16: #{tpu_custom_call.1} parent=1 // pred_region
      %v112 = vld [vmem:[#allocation5] sm:$0xff]
      %v113 = vmul.f32 %v112, 0.5859375
      %114 = vst.msk [vmem:[#allocation5] sm:$0xff] %vm107, %v113
    $region17: #{tpu_custom_call.1} parent=1 // pred_fallthru
      _
    // Predicated region
    $region18: #{tpu_custom_call.1} parent=1 // pred_check
      _
    $region19: #{tpu_custom_call.1} parent=1 // pred_check_branch
      %116 = sbr.rel (0) target = $region21
    $region20: #{tpu_custom_call.1} parent=1 // pred_region
      %s118 = ssub.s32 128, 128
      %119 = vsyncadd [#allocation4], %s118
      %s121 = sshll.u32 [#allocation5], 4
      %s122 = int_to_ptr.vmem [resolvable:$true] %s121
      %124 = dma.vmem_to_hbm [thread:$0]  %s122, 128, %s1, [#allocation4]
    $region21: #{tpu_custom_call.1} parent=1 // pred_fallthru
      _
    // Predicated region
    $region22: #{tpu_custom_call.1} parent=1 // pred_check
      _
    $region23: #{tpu_custom_call.1} parent=1 // pred_check_branch
      %126 = sbr.rel (0) target = $region25
    $region24: #{tpu_custom_call.1} parent=1 // pred_region
      %127 = dma.done [#allocation4], 128
    $region25: #{tpu_custom_call.1} parent=1 // pred_fallthru
      _
    %128 = vsyncpa [#allocation3], 1
    %129 = vsyncpa [#allocation4], 1

</llo_original>
